<compile_context>
chip_gen: v6e
topology: v6e:2x2x1
jax: 0.10.0
libtpu: 0.0.40
codegen_flags: <defaults>
</compile_context>

<pallas_src>
import functools

import jax
import jax.numpy as jnp
from jax import lax
from jax.experimental import pallas as pl
from jax.experimental.pallas import tpu as pltpu

LANES = 128
SUBLANES = 8


def _asym_huber_pointwise(pred, true, delta, alpha, beta):
    """Elementwise asymmetric-Huber loss (same math as the torch module)."""
    error = true - pred
    abs_error = jnp.abs(error)
    quadratic = 0.5 * error * error
    linear = delta * (abs_error - 0.5 * delta)
    loss = jnp.where(abs_error < delta, quadratic, linear)
    pos = loss if alpha == 1.0 else alpha * loss
    neg = loss if beta == 1.0 else beta * loss
    return jnp.where(error > 0, pos, neg)


def _asym_huber_kernel(pred_ref, true_ref, out_ref, *,
                       delta, alpha, beta, rows_valid,
                       tile_rows, inner, total_tiles, need_mask):
    p = pl.program_id(0)   # TensorCore split ("parallel")
    k = pl.program_id(1)   # streaming reduction axis ("arbitrary")

    # Output block is resident across the inner axis -> per-lane accumulator.
    @pl.when(k == 0)
    def _():
        out_ref[...] = jnp.zeros_like(out_ref)

    pred = pred_ref[...].astype(jnp.float32)
    true = true_ref[...].astype(jnp.float32)
    loss = _asym_huber_pointwise(pred, true, delta, alpha, beta)

    def lane_partials(x):
        # (tile_rows, 128) -> (8, 128) via VPU adds only (no cross-lane work).
        return x.reshape(tile_rows // SUBLANES, SUBLANES, LANES).sum(axis=0)

    if not need_mask:
        # Slab divides evenly into tiles: no masking anywhere.
        out_ref[...] += lane_partials(loss)
    else:
        tile_idx = p * inner + k
        is_last = tile_idx == total_tiles - 1

        @pl.when(jnp.logical_not(is_last))
        def _():
            out_ref[...] += lane_partials(loss)

        # Only the final (ragged) tile pays for the row mask.
        @pl.when(is_last)
        def _():
            row_ids = lax.broadcasted_iota(jnp.int32, (tile_rows, LANES), 0)
            global_row = tile_idx * tile_rows + row_ids
            masked = jnp.where(global_row < rows_valid, loss, 0.0)
            out_ref[...] += lane_partials(masked)


def asymmetric_huber_loss(y_pred, y_true, delta=1.0, alpha=1.0, beta=5.0,
                          tile_rows=8192):
    assert y_pred.shape == y_true.shape
    n = int(y_pred.size)
    delta = float(delta)
    alpha = float(alpha)
    beta = float(beta)

    flat_pred = jnp.ravel(y_pred)
    flat_true = jnp.ravel(y_true)

    rows = n // LANES
    # Tiny arrays (< 8 rows of 128 lanes) are not worth a kernel launch; they
    # go through the plain-JAX tail path below.
    rows_main = rows if rows >= SUBLANES else 0
    n_main = rows_main * LANES

    total = jnp.float32(0.0)

    if n_main:
        # 128-aligned prefix only; when n % 128 == 0 this is the whole array
        # and the reshape is metadata-only (no HBM copy).
        pred2d = flat_pred[:n_main].reshape(rows_main, LANES)
        true2d = flat_true[:n_main].reshape(rows_main, LANES)

        # Tile sizing: multiple of 8 rows, capped by the slab height.
        tr = min(int(tile_rows), rows_main)
        tr = max(SUBLANES, (tr // SUBLANES) * SUBLANES)
        total_tiles = pl.cdiv(rows_main, tr)

        # Nudge the tile count to be even so the leading "parallel" axis can be
        # sharded across the two TensorCores of v7x.
        if total_tiles > 1 and total_tiles % 2 != 0:
            cand = max(SUBLANES,
                       pl.cdiv(pl.cdiv(rows_main, total_tiles + 1), SUBLANES)
                       * SUBLANES)
            if pl.cdiv(rows_main, cand) % 2 == 0:
                tr = cand
                total_tiles = pl.cdiv(rows_main, tr)

        num_splits = 2 if (total_tiles % 2 == 0 and total_tiles >= 2) else 1
        inner = total_tiles // num_splits
        need_mask = (rows_main % tr) != 0

        itemsize = jnp.dtype(y_pred.dtype).itemsize
        # 2 inputs x 2 pipeline buffers x tile, plus headroom; keep within the
        # v5e 16 MiB scoped default -> raise explicitly (well below physical
        # VMEM on all of v5e/v6e/v7x).
        vmem_bytes = 4 * tr * LANES * itemsize + (4 << 20)
        vmem_bytes = int(min(max(vmem_bytes, 16 << 20), 48 << 20))

        kernel = functools.partial(
            _asym_huber_kernel,
            delta=delta, alpha=alpha, beta=beta,
            rows_valid=rows_main, tile_rows=tr,
            inner=inner, total_tiles=total_tiles, need_mask=need_mask)

        in_map = lambda p, k: (p * inner + k, 0)

        partials = pl.pallas_call(
            kernel,
            out_shape=jax.ShapeDtypeStruct((num_splits * SUBLANES, LANES),
                                           jnp.float32),
            grid_spec=pltpu.PrefetchScalarGridSpec(
                num_scalar_prefetch=0,
                grid=(num_splits, inner),
                in_specs=[
                    pl.BlockSpec((tr, LANES), in_map),
                    pl.BlockSpec((tr, LANES), in_map),
                ],
                out_specs=pl.BlockSpec((SUBLANES, LANES), lambda p, k: (p, 0)),
            ),
            compiler_params=pltpu.CompilerParams(
                dimension_semantics=("parallel", "arbitrary"),
                vmem_limit_bytes=vmem_bytes),
            cost_estimate=pl.CostEstimate(
                flops=12 * n_main,
                transcendentals=0,
                bytes_accessed=2 * n_main * itemsize
                + num_splits * SUBLANES * LANES * 4),
        )(pred2d, true2d)

        # Tiny final cross-lane reduction outside the kernel.
        total = total + jnp.sum(partials)

    # <128-element tail (or tiny arrays): plain JAX, negligible cost, avoids a
    # full-array pad/copy of both inputs.
    n_tail = n - n_main
    if n_tail:
        tp = flat_pred[n_main:].astype(jnp.float32)
        tt = flat_true[n_main:].astype(jnp.float32)
        total = total + jnp.sum(_asym_huber_pointwise(tp, tt, delta, alpha, beta))

    return total * jnp.float32(1.0 / n)


def _reference(y_pred, y_true, delta=1.0, alpha=1.0, beta=5.0):
    error = y_true - y_pred
    abs_error = jnp.abs(error)
    quadratic = 0.5 * error ** 2
    linear = delta * (abs_error - 0.5 * delta)
    loss = jnp.where(abs_error < delta, quadratic, linear)
    loss = jnp.where(error > 0, alpha * loss, beta * loss)
    return jnp.mean(loss)


if __name__ == "__main__":
    key = jax.random.PRNGKey(0)
    k1, k2 = jax.random.split(key)
    # Typical NCHW-style prediction tensor, small shape.
    shape = (2, 4, 16, 16)
    y_pred = jax.random.normal(k1, shape, dtype=jnp.float32)
    y_true = jax.random.normal(k2, shape, dtype=jnp.float32)

    out = asymmetric_huber_loss(y_pred, y_true, delta=1.0, alpha=1.0, beta=5.0)
    out = jax.block_until_ready(out)

    ref = _reference(y_pred, y_true)
    assert jnp.allclose(out, ref, rtol=1e-5, atol=1e-6), (out, ref)
    print("KERNEL_OK")
</pallas_src>

<mosaic_0001>
module attributes {stable_mosaic.version = 11 : i64} {
  func.func @_asym_huber_kernel(%arg0: i32, %arg1: i32, %arg2: memref<16x128xf32, #tpu.memory_space<vmem>>, %arg3: memref<16x128xf32, #tpu.memory_space<vmem>>, %arg4: memref<8x128xf32, #tpu.memory_space<vmem>>) attributes {dimension_semantics = [#tpu.dimension_semantics<parallel>, #tpu.dimension_semantics<arbitrary>], iteration_bounds = array<i64: 1, 1>, scalar_prefetch = 0 : i64, scratch_operands = 0 : i64, tpu.core_type = #tpu.core_type<tc>, window_params = [{transform_indices = @transform_0, window_bounds = array<i64: 16, 128>}, {transform_indices = @transform_1, window_bounds = array<i64: 16, 128>}, {transform_indices = @transform_2, window_bounds = array<i64: 8, 128>}]} {
    %c0_i32 = arith.constant 0 : i32
    %0 = arith.cmpi eq, %arg1, %c0_i32 : i32
    %1 = arith.extui %0 : i1 to i32
    %c0_i32_0 = arith.constant 0 : i32
    %2 = arith.cmpi ne, %1, %c0_i32_0 : i32
    scf.if %2 {
      %cst_14 = arith.constant 0.000000e+00 : f32
      %27 = vector.broadcast %cst_14 : f32 to vector<8x128xf32>
      %c0_15 = arith.constant 0 : index
      %c0_16 = arith.constant 0 : index
      %28 = vector.load %arg4[%c0_15, %c0_16] : memref<8x128xf32, #tpu.memory_space<vmem>>, vector<8x128xf32>
      tpu.vector_store %arg4[%c0_15, %c0_16], %27 {strides = array<i32>} : memref<8x128xf32, #tpu.memory_space<vmem>>, vector<8x128xf32>,
    } else {
    }
    %c0 = arith.constant 0 : index
    %c0_1 = arith.constant 0 : index
    %3 = vector.load %arg2[%c0, %c0_1] : memref<16x128xf32, #tpu.memory_space<vmem>>, vector<16x128xf32>
    %c0_2 = arith.constant 0 : index
    %c0_3 = arith.constant 0 : index
    %4 = vector.load %arg3[%c0_2, %c0_3] : memref<16x128xf32, #tpu.memory_space<vmem>>, vector<16x128xf32>
    %5 = arith.subf %4, %3 : vector<16x128xf32>
    %6 = math.absf %5 : vector<16x128xf32>
    %cst = arith.constant 5.000000e-01 : f32
    %7 = vector.broadcast %cst : f32 to vector<16x128xf32>
    %8 = arith.mulf %7, %5 : vector<16x128xf32>
    %9 = arith.mulf %8, %5 : vector<16x128xf32>
    %cst_4 = arith.constant 5.000000e-01 : f32
    %10 = vector.broadcast %cst_4 : f32 to vector<16x128xf32>
    %11 = arith.subf %6, %10 : vector<16x128xf32>
    %cst_5 = arith.constant 1.000000e+00 : f32
    %12 = vector.broadcast %cst_5 : f32 to vector<16x128xf32>
    %13 = arith.mulf %12, %11 : vector<16x128xf32>
    %cst_6 = arith.constant 1.000000e+00 : f32
    %14 = vector.broadcast %cst_6 : f32 to vector<16x128xf32>
    %15 = arith.cmpf olt, %6, %14 : vector<16x128xf32>
    %16 = arith.select %15, %9, %13 : vector<16x128xi1>, vector<16x128xf32>
    %cst_7 = arith.constant 5.000000e+00 : f32
    %17 = vector.broadcast %cst_7 : f32 to vector<16x128xf32>
    %18 = arith.mulf %17, %16 : vector<16x128xf32>
    %cst_8 = arith.constant 0.000000e+00 : f32
    %19 = vector.broadcast %cst_8 : f32 to vector<16x128xf32>
    %20 = arith.cmpf ogt, %5, %19 : vector<16x128xf32>
    %21 = arith.select %20, %16, %18 : vector<16x128xi1>, vector<16x128xf32>
    %c0_9 = arith.constant 0 : index
    %c0_10 = arith.constant 0 : index
    %22 = vector.load %arg4[%c0_9, %c0_10] : memref<8x128xf32, #tpu.memory_space<vmem>>, vector<8x128xf32>
    %23 = vector.shape_cast %21 : vector<16x128xf32> to vector<2x8x128xf32>
    %cst_11 = arith.constant dense<0.000000e+00> : vector<8x128xf32>
    %24 = vector.multi_reduction <add>, %23, %cst_11 [0] : vector<2x8x128xf32> to vector<8x128xf32>
    %25 = arith.addf %22, %24 : vector<8x128xf32>
    %c0_12 = arith.constant 0 : index
    %c0_13 = arith.constant 0 : index
    %26 = vector.load %arg4[%c0_12, %c0_13] : memref<8x128xf32, #tpu.memory_space<vmem>>, vector<8x128xf32>
    tpu.vector_store %arg4[%c0_12, %c0_13], %25 {strides = array<i32>} : memref<8x128xf32, #tpu.memory_space<vmem>>, vector<8x128xf32>,
    return
  }
  func.func @transform_0(%arg0: i32, %arg1: i32) -> (i32, i32) {
    %c1_i32 = arith.constant 1 : i32
    %0 = arith.muli %arg0, %c1_i32 : i32
    %1 = arith.addi %0, %arg1 : i32
    %c0_i32 = arith.constant 0 : i32
    %c0_i32_0 = arith.constant 0 : i32
    return %1, %c0_i32 : i32, i32
  }
  func.func @transform_1(%arg0: i32, %arg1: i32) -> (i32, i32) {
    %c1_i32 = arith.constant 1 : i32
    %0 = arith.muli %arg0, %c1_i32 : i32
    %1 = arith.addi %0, %arg1 : i32
    %c0_i32 = arith.constant 0 : i32
    %c0_i32_0 = arith.constant 0 : i32
    return %1, %c0_i32 : i32, i32
  }
  func.func @transform_2(%arg0: i32, %arg1: i32) -> (i32, i32) {
    %c0_i32 = arith.constant 0 : i32
    %c0_i32_0 = arith.constant 0 : i32
    return %arg0, %c0_i32 : i32, i32
  }
}

</mosaic_0001>

<llo_original>
// kernel: tpu_custom_call.1
$region0: #{tpu_custom_call.1}
  #allocation0 [shape = 'u32[]', space=smem, size = 0x4, offset = 0x4, fixed_abs, tag = 'smem constant byte address 0x4 - core index']
  #allocation1 [shape = 'u32[144,128]{1,0:T(1,128)}', space=vmem, size = 0x12000, scoped, tag = 'internal scratch']
  %s0 = inlined_call_operand.hbm [shape: f32[16,128], index: 0, kind: input, shape index: {}]
  %s1 = inlined_call_operand.hbm [shape: f32[16,128], index: 1, kind: input, shape index: {}]
  %s2 = inlined_call_operand.hbm [shape: f32[8,128], index: 2, kind: output, shape index: {}]
  %s3 = sld [smem:[#allocation0]]
  $region30: #{tpu_custom_call.1} parent=0
    _
  %s5 = ssub.s32 1, %s3
  %s6 = scalar_select 0, %s5, %s3
  $region1: #{tpu_custom_call.1} parent=0
    #allocation2 [shape = 'u8[8192]{0}', space=vmem, size = 0x2000, scoped, tag = 'input window, operand 0, single buffered']
    #allocation3 [shape = 's32[1]{0}', space=sflag, size = 0x4, scoped, tag = 'scoped memory for tpu_custom_call.1']
    #allocation4 [shape = 's32[1]{0}', space=sflag, size = 0x4, scoped, tag = 'scoped memory for tpu_custom_call.1']
    #allocation5 [shape = 'u8[8192]{0}', space=vmem, size = 0x2000, scoped, tag = 'input window, operand 1, single buffered']
    #allocation6 [shape = 's32[1]{0}', space=sflag, size = 0x4, scoped, tag = 'scoped memory for tpu_custom_call.1']
    #allocation7 [shape = 'u8[4096]{0}', space=vmem, size = 0x1000, scoped, tag = 'output window, operand 0, single buffered']
    %7 = vsyncpa [#allocation3], 0
    %8 = vsyncpa [#allocation6], 0
    %9 = vsyncpa [#allocation4], 0
    // Predicated region
    $region2: #{tpu_custom_call.1} parent=1 // pred_check
      _
    $region3: #{tpu_custom_call.1} parent=1 // pred_check_branch
      %11 = sbr.rel (0) target = $region5
    $region4: #{tpu_custom_call.1} parent=1 // pred_region
      %s12 = sadd.s32 0, 0
      %s13 = smul.u32 2, %s12
      %s15 = ssub.s32 256, 256
      %16 = vsyncadd [#allocation3], %s15
      %s17 = smul.addr %s13, 128
      %s18 = scalar_lea.hbm %s0, %s17
      %s19 = sshll.u32 [#allocation2], 4
      %s20 = int_to_ptr.vmem [resolvable:$true] %s19
      %25 = dma.hbm_to_vmem [thread:$0]  %s18, 256, %s20, [#allocation3], 128, 128, 8
    $region5: #{tpu_custom_call.1} parent=1 // pred_fallthru
      _
    // Predicated region
    $region6: #{tpu_custom_call.1} parent=1 // pred_check
      _
    $region7: #{tpu_custom_call.1} parent=1 // pred_check_branch
      %27 = sbr.rel (0) target = $region9
    $region8: #{tpu_custom_call.1} parent=1 // pred_region
      %s28 = sadd.s32 0, 0
      %s29 = smul.u32 2, %s28
      %s31 = ssub.s32 256, 256
      %32 = vsyncadd [#allocation6], %s31
      %s33 = smul.addr %s29, 128
      %s34 = scalar_lea.hbm %s1, %s33
      %s35 = sshll.u32 [#allocation5], 4
      %s36 = int_to_ptr.vmem [resolvable:$true] %s35
      %41 = dma.hbm_to_vmem [thread:$0]  %s34, 256, %s36, [#allocation6], 128, 128, 8
    $region9: #{tpu_custom_call.1} parent=1 // pred_fallthru
      _
    // Predicated region
    $region10: #{tpu_custom_call.1} parent=1 // pred_check
      _
    $region11: #{tpu_custom_call.1} parent=1 // pred_check_branch
      %43 = sbr.rel (0) target = $region13
    $region12: #{tpu_custom_call.1} parent=1 // pred_region
      %44 = dma.done [#allocation3], 256
    $region13: #{tpu_custom_call.1} parent=1 // pred_fallthru
      _
    // Predicated region
    $region14: #{tpu_custom_call.1} parent=1 // pred_check
      _
    $region15: #{tpu_custom_call.1} parent=1 // pred_check_branch
      %46 = sbr.rel (0) target = $region17
    $region16: #{tpu_custom_call.1} parent=1 // pred_region
      %47 = dma.done [#allocation6], 256
    $region17: #{tpu_custom_call.1} parent=1 // pred_fallthru
      _
    %s48 = sadd.s32 0, 0
    %s49 = smul.u32 2, %s48
    %s50 = sadd.s32 0, 0
    %s51 = smul.u32 2, %s50
    %p52 = scmp.eq.s32.totalorder 0, 0
    // Predicated region
    $region18: #{tpu_custom_call.1} parent=1 // pred_check
      %p53 = pneg %p52
    $region19: #{tpu_custom_call.1} parent=1 // pred_check_branch
      %55 = sbr.rel (%p53) target = $region21
    $region20: #{tpu_custom_call.1} parent=1 // pred_region
      %56 = vst [vmem:[#allocation7] sm:$0xff] 0.0
    $region21: #{tpu_custom_call.1} parent=1 // pred_fallthru
      _
    %v57 = vld [vmem:[#allocation2] sm:$0xff]
    %v58 = vld [vmem:[#allocation2 + $0x8] sm:$0xff]
    %v59 = vld [vmem:[#allocation5] sm:$0xff]
    %v60 = vld [vmem:[#allocation5 + $0x8] sm:$0xff]
    %v61 = vsub.f32 %v59, %v57
    %v62 = vsub.f32 %v60, %v58
    %v63 = vand.u32 2147483647, %v61
    %v64 = vand.u32 2147483647, %v62
    %v65 = vmul.f32 %v61, 0.5
    %v66 = vmul.f32 %v62, 0.5
    %v67 = vmul.f32 %v65, %v61
    %v68 = vmul.f32 %v66, %v62
    %v69 = vsub.f32 %v63, 0.5
    %v70 = vsub.f32 %v64, 0.5
    %vm71 = vcmp.lt.f32.partialorder %v63, 1.0
    %vm72 = vcmp.lt.f32.partialorder %v64, 1.0
    %v73 = vsel %vm71, %v67, %v69
    %v74 = vsel %vm72, %v68, %v70
    %v75 = vmul.f32 %v73, 5.0
    %v76 = vmul.f32 %v74, 5.0
    %vm77 = vcmp.gt.f32.partialorder %v61, 0.0
    %vm78 = vcmp.gt.f32.partialorder %v62, 0.0
    %v79 = vsel %vm77, %v73, %v75
    %v80 = vsel %vm78, %v74, %v76
    %v81 = vld [vmem:[#allocation7] sm:$0xff]
    %v82 = vadd.f32 %v79, %v80
    %v83 = vadd.f32 %v81, %v82
    %84 = vst [vmem:[#allocation7] sm:$0xff] %v83
    // Predicated region
    $region22: #{tpu_custom_call.1} parent=1 // pred_check
      _
    $region23: #{tpu_custom_call.1} parent=1 // pred_check_branch
      %86 = sbr.rel (0) target = $region25
    $region24: #{tpu_custom_call.1} parent=1 // pred_region
      %s88 = ssub.s32 128, 128
      %89 = vsyncadd [#allocation4], %s88
      %s91 = sshll.u32 [#allocation7], 4
      %s92 = int_to_ptr.vmem [resolvable:$true] %s91
      %94 = dma.vmem_to_hbm [thread:$0]  %s92, 128, %s2, [#allocation4]
    $region25: #{tpu_custom_call.1} parent=1 // pred_fallthru
      _
    // Predicated region
    $region26: #{tpu_custom_call.1} parent=1 // pred_check
      _
    $region27: #{tpu_custom_call.1} parent=1 // pred_check_branch
      %96 = sbr.rel (0) target = $region29
    $region28: #{tpu_custom_call.1} parent=1 // pred_region
      %97 = dma.done [#allocation4], 128
    $region29: #{tpu_custom_call.1} parent=1 // pred_fallthru
      _
    %98 = vsyncpa [#allocation3], 1
    %99 = vsyncpa [#allocation6], 1
    %100 = vsyncpa [#allocation4], 1

</llo_original>
